<compile_context>
chip_gen: v6e
topology: v6e:2x2x1
jax: 0.10.0
libtpu: 0.0.40
codegen_flags: <defaults>
</compile_context>

<pallas_src>
import functools

import jax
import jax.numpy as jnp
from jax.experimental import pallas as pl
from jax.experimental.pallas import tpu as pltpu

_LANE = 128
_VMEM_LIMIT = 64 * 1024 * 1024


def _round_up(n, m):
    return (n + m - 1) // m * m


# ---------------------------------------------------------------------------
# Kernel A: h = sigmoid(x @ W1 + b1);  logits = relu(h @ Gw1 + gb1) @ Gw2 + gb2
#   grid = (num_batch_tiles,)  -- "parallel"
# ---------------------------------------------------------------------------
def _stem_gate_kernel(x_ref, w1_ref, b1_ref, gw1_ref, gb1_ref, gw2_ref, gb2_ref,
                      h_ref, logits_ref):
    x = x_ref[...]                                            # bf16 [Tb, IN]
    h = jax.nn.sigmoid(
        jnp.dot(x, w1_ref[...], preferred_element_type=jnp.float32)
        + b1_ref[...])                                        # f32 [Tb, H]
    h_bf = h.astype(jnp.bfloat16)
    g = jnp.maximum(
        jnp.dot(h_bf, gw1_ref[...], preferred_element_type=jnp.float32)
        + gb1_ref[...], 0.0)
    logits_ref[...] = (jnp.dot(g.astype(jnp.bfloat16), gw2_ref[...],
                               preferred_element_type=jnp.float32)
                       + gb2_ref[...])
    h_ref[...] = h_bf


# ---------------------------------------------------------------------------
# Kernel B: routed experts streamed over grid axis 1 ("arbitrary"),
#           shared expert + residual + fc2 on the last expert step.
#   grid = (num_batch_tiles, n_experts)
# ---------------------------------------------------------------------------
def _moe_combine_kernel(h_ref, comb_ref, ew_ref, eb_ref, sw_ref, sb_ref,
                        scales_ref, w2_ref, b2_ref, out_ref, router_ref,
                        *, n_layers):
    e = pl.program_id(1)
    n_e = pl.num_programs(1)

    @pl.when(e == 0)
    def _():
        router_ref[...] = jnp.zeros_like(router_ref)

    h_bf = h_ref[...]                                          # bf16 [Tb, H]

    # Expert e, evaluated densely on this batch tile; rows not routed to this
    # expert carry a zero combine weight, so the result matches the masked
    # per-expert loop of the reference exactly.
    xe = h_bf.astype(jnp.float32)
    for l in range(n_layers):
        y = (jnp.dot(xe.astype(jnp.bfloat16), ew_ref[0, l],
                     preferred_element_type=jnp.float32) + eb_ref[0, l])
        xe = jax.nn.sigmoid(y) + xe

    comb_e = comb_ref[0, :, :]                                 # f32 [Tb, 1]
    router_ref[...] += comb_e * xe

    @pl.when(e == n_e - 1)
    def _():
        h = h_bf.astype(jnp.float32)
        shared = jax.nn.sigmoid(
            jnp.dot(h_bf, sw_ref[...], preferred_element_type=jnp.float32)
            + sb_ref[...])
        final = (h + scales_ref[0] * shared + scales_ref[1] * router_ref[...])
        out_ref[...] = (jnp.dot(final.astype(jnp.bfloat16), w2_ref[...],
                                preferred_element_type=jnp.float32)
                        + b2_ref[...])


# ---------------------------------------------------------------------------
# Parameter initialization (deterministic, PyTorch-Linear-style uniform)
# ---------------------------------------------------------------------------
def _linear_init(key, fan_in, fan_out):
    kw, kb = jax.random.split(key)
    bound = 1.0 / (fan_in ** 0.5)
    w = jax.random.uniform(kw, (fan_in, fan_out), jnp.float32, -bound, bound)
    b = jax.random.uniform(kb, (1, fan_out), jnp.float32, -bound, bound)
    return w, b


def init_params(key, in_features, out_features, hidden_dim, gating_dim,
                n_experts, n_layers_per_expert):
    n_keys = 6 + n_experts * n_layers_per_expert
    keys = jax.random.split(key, n_keys)
    p = {}
    p["w1"], p["b1"] = _linear_init(keys[0], in_features, hidden_dim)
    p["gw1"], p["gb1"] = _linear_init(keys[1], hidden_dim, gating_dim)
    p["gw2"], p["gb2"] = _linear_init(keys[2], gating_dim, n_experts)
    p["sw"], p["sb"] = _linear_init(keys[3], hidden_dim, hidden_dim)
    p["w2"], p["b2"] = _linear_init(keys[4], hidden_dim, out_features)
    ew, eb = [], []
    kidx = 5
    for _ in range(n_experts):
        ws, bs = [], []
        for _ in range(n_layers_per_expert):
            w, b = _linear_init(keys[kidx], hidden_dim, hidden_dim)
            kidx += 1
            ws.append(w)
            bs.append(b)
        ew.append(jnp.stack(ws))             # [L, H, H]
        eb.append(jnp.stack(bs))             # [L, 1, H]
    p["ew"] = jnp.stack(ew)                  # [E, L, H, H]
    p["eb"] = jnp.stack(eb)                  # [E, L, 1, H]
    # nn.Parameter(torch.tensor(1, dtype=torch.float32))
    p["shared_expert_weight"] = jnp.array(1.0, jnp.float32)
    p["router_experts_weight"] = jnp.array(1.0, jnp.float32)
    return p


def _pad2(a, rows, cols):
    return jnp.pad(a, ((0, rows - a.shape[0]), (0, cols - a.shape[1])))


def prepare_params(p):
    """Pad all feature dims to multiples of 128 and cast matmul weights to bf16.

    Zero padding of weight rows/cols keeps the valid output columns exact
    (padded activation lanes only ever multiply zero weight rows).
    """
    in_f, hidden = p["w1"].shape
    gating = p["gw1"].shape[1]
    n_exp = p["gw2"].shape[1]
    out_f = p["w2"].shape[1]

    IN = _round_up(in_f, _LANE)
    H = _round_up(hidden, _LANE)
    G = _round_up(gating, _LANE)
    EL = _round_up(n_exp, _LANE)
    OP = _round_up(out_f, _LANE)

    d = {}
    d["w1"] = _pad2(p["w1"], IN, H).astype(jnp.bfloat16)
    d["b1"] = _pad2(p["b1"], 1, H)
    d["gw1"] = _pad2(p["gw1"], H, G).astype(jnp.bfloat16)
    d["gb1"] = _pad2(p["gb1"], 1, G)
    d["gw2"] = _pad2(p["gw2"], G, EL).astype(jnp.bfloat16)
    d["gb2"] = _pad2(p["gb2"], 1, EL)
    d["sw"] = _pad2(p["sw"], H, H).astype(jnp.bfloat16)
    d["sb"] = _pad2(p["sb"], 1, H)
    d["w2"] = _pad2(p["w2"], H, OP).astype(jnp.bfloat16)
    d["b2"] = _pad2(p["b2"], 1, OP)
    d["ew"] = jnp.pad(
        p["ew"], ((0, 0), (0, 0), (0, H - hidden), (0, H - hidden))
    ).astype(jnp.bfloat16)                                   # [E, L, H, H]
    d["eb"] = jnp.pad(p["eb"], ((0, 0), (0, 0), (0, 0), (0, H - hidden)))
    d["scales"] = jnp.stack(
        [p["shared_expert_weight"], p["router_experts_weight"]]
    ).astype(jnp.float32)                                    # [2] in SMEM
    d["_meta"] = dict(in_features=in_f, hidden=hidden, gating=gating,
                      n_experts=n_exp, out_features=out_f)
    return d


# ---------------------------------------------------------------------------
# Forward wrapper
# ---------------------------------------------------------------------------
def moe_nn_forward(dev, x, noise_key, *, top_k=2, gating_noise_std=0.01,
                   balancing_coef=0.01, return_gate_loss=False, tile_b=512):
    meta = dev["_meta"]
    E = meta["n_experts"]
    out_features = meta["out_features"]

    B, in_f = x.shape
    IN, H = dev["w1"].shape
    G = dev["gw1"].shape[1]
    EL = dev["gw2"].shape[1]
    OP = dev["w2"].shape[1]
    L = dev["ew"].shape[1]

    TILE_B = min(tile_b, _round_up(B, 8))
    B_pad = _round_up(B, TILE_B)
    nb = B_pad // TILE_B

    xp = jnp.pad(x, ((0, B_pad - B), (0, IN - in_f))).astype(jnp.bfloat16)

    # --- Kernel A: fc1 + sigmoid, gating logits (lane-padded) ---
    h, logits_p = pl.pallas_call(
        _stem_gate_kernel,
        grid=(nb,),
        in_specs=[
            pl.BlockSpec((TILE_B, IN), lambda i: (i, 0)),
            pl.BlockSpec((IN, H), lambda i: (0, 0)),
            pl.BlockSpec((1, H), lambda i: (0, 0)),
            pl.BlockSpec((H, G), lambda i: (0, 0)),
            pl.BlockSpec((1, G), lambda i: (0, 0)),
            pl.BlockSpec((G, EL), lambda i: (0, 0)),
            pl.BlockSpec((1, EL), lambda i: (0, 0)),
        ],
        out_specs=(pl.BlockSpec((TILE_B, H), lambda i: (i, 0)),
                   pl.BlockSpec((TILE_B, EL), lambda i: (i, 0))),
        out_shape=(jax.ShapeDtypeStruct((B_pad, H), jnp.bfloat16),
                   jax.ShapeDtypeStruct((B_pad, EL), jnp.float32)),
        compiler_params=pltpu.CompilerParams(
            dimension_semantics=("parallel",),
            vmem_limit_bytes=_VMEM_LIMIT),
    )(xp, dev["w1"], dev["b1"], dev["gw1"], dev["gb1"], dev["gw2"], dev["gb2"])

    # --- glue: softmax + noise, top-k routing -> dense combine weights ---
    logits = logits_p[:, :E]                                 # [B_pad, E]
    gating_weights = jax.nn.softmax(logits, axis=-1)
    if gating_noise_std:
        noise = (jax.random.normal(noise_key, (B, E), jnp.float32)
                 * gating_noise_std)
        noise = jnp.pad(noise, ((0, B_pad - B), (0, 0)))
    else:
        noise = jnp.zeros((B_pad, E), jnp.float32)
    gating_weights = gating_weights + noise

    top_w, top_i = jax.lax.top_k(gating_weights, top_k)
    top_w = top_w / jnp.sum(top_w, axis=-1, keepdims=True)
    comb = jnp.sum(jax.nn.one_hot(top_i, E, dtype=jnp.float32)
                   * top_w[..., None], axis=1)               # [B_pad, E]
    comb_t = jnp.transpose(comb)[:, :, None]                 # [E, B_pad, 1]

    # --- Kernel B: streamed experts + shared expert + residual + fc2 ---
    out_p = pl.pallas_call(
        functools.partial(_moe_combine_kernel, n_layers=L),
        grid=(nb, E),
        in_specs=[
            pl.BlockSpec((TILE_B, H), lambda i, e: (i, 0)),          # h (bf16)
            pl.BlockSpec((1, TILE_B, 1), lambda i, e: (e, i, 0)),    # comb
            pl.BlockSpec((1, L, H, H), lambda i, e: (e, 0, 0, 0)),   # ew stream
            pl.BlockSpec((1, L, 1, H), lambda i, e: (e, 0, 0, 0)),   # eb stream
            pl.BlockSpec((H, H), lambda i, e: (0, 0)),               # sw
            pl.BlockSpec((1, H), lambda i, e: (0, 0)),               # sb
            pl.BlockSpec(memory_space=pltpu.MemorySpace.SMEM),       # scales
            pl.BlockSpec((H, OP), lambda i, e: (0, 0)),              # w2
            pl.BlockSpec((1, OP), lambda i, e: (0, 0)),              # b2
        ],
        out_specs=pl.BlockSpec((TILE_B, OP), lambda i, e: (i, 0)),
        out_shape=jax.ShapeDtypeStruct((B_pad, OP), jnp.float32),
        scratch_shapes=[pltpu.VMEM((TILE_B, H), jnp.float32)],
        compiler_params=pltpu.CompilerParams(
            dimension_semantics=("parallel", "arbitrary"),
            vmem_limit_bytes=_VMEM_LIMIT),
    )(h, comb_t, dev["ew"], dev["eb"], dev["sw"], dev["sb"], dev["scales"],
      dev["w2"], dev["b2"])

    out = out_p[:B, :out_features]

    if return_gate_loss:
        experts_prob = jnp.mean(gating_weights[:B], axis=0)
        target_prob = jnp.ones((E,), jnp.float32) / E
        gate_loss = jnp.mean((target_prob - experts_prob) ** 2) * balancing_coef
    else:
        gate_loss = jnp.array(0, jnp.int32)   # matches torch.tensor(0)
    return out, gate_loss


# ---------------------------------------------------------------------------
if __name__ == "__main__":
    # small shapes consistent with the module
    B = 8
    in_features = 16
    out_features = 8
    hidden_dim = 32
    gating_dim = 8
    n_experts = 8
    top_k = 2
    n_layers_per_expert = 1

    root = jax.random.PRNGKey(0)
    k_params, k_x, k_noise = jax.random.split(root, 3)

    params = init_params(k_params, in_features, out_features, hidden_dim,
                         gating_dim, n_experts, n_layers_per_expert)
    dev_params = prepare_params(params)
    x = jax.random.normal(k_x, (B, in_features), jnp.float32)

    out, gate_loss = moe_nn_forward(dev_params, x, k_noise, top_k=top_k,
                                    gating_noise_std=0.01,
                                    balancing_coef=0.01,
                                    return_gate_loss=False)
    jax.block_until_ready(out)
    jax.block_until_ready(gate_loss)
    assert out.shape == (B, out_features)
    print("KERNEL_OK")
</pallas_src>

<mosaic_0001>
module attributes {stable_mosaic.version = 11 : i64} {
  func.func @_stem_gate_kernel(%arg0: i32, %arg1: memref<8x128xbf16, #tpu.memory_space<vmem>>, %arg2: memref<128x128xbf16, #tpu.memory_space<vmem>>, %arg3: memref<1x128xf32, #tpu.memory_space<vmem>>, %arg4: memref<128x128xbf16, #tpu.memory_space<vmem>>, %arg5: memref<1x128xf32, #tpu.memory_space<vmem>>, %arg6: memref<128x128xbf16, #tpu.memory_space<vmem>>, %arg7: memref<1x128xf32, #tpu.memory_space<vmem>>, %arg8: memref<8x128xbf16, #tpu.memory_space<vmem>>, %arg9: memref<8x128xf32, #tpu.memory_space<vmem>>) attributes {dimension_semantics = [#tpu.dimension_semantics<parallel>], iteration_bounds = array<i64: 1>, scalar_prefetch = 0 : i64, scratch_operands = 0 : i64, tpu.core_type = #tpu.core_type<tc>, window_params = [{transform_indices = @transform_0, window_bounds = array<i64: 8, 128>}, {pipeline_mode = #tpu.pipeline_mode<synchronous>, transform_indices = @transform_1, window_bounds = array<i64: 128, 128>}, {pipeline_mode = #tpu.pipeline_mode<synchronous>, transform_indices = @transform_2, window_bounds = array<i64: 1, 128>}, {pipeline_mode = #tpu.pipeline_mode<synchronous>, transform_indices = @transform_3, window_bounds = array<i64: 128, 128>}, {pipeline_mode = #tpu.pipeline_mode<synchronous>, transform_indices = @transform_4, window_bounds = array<i64: 1, 128>}, {pipeline_mode = #tpu.pipeline_mode<synchronous>, transform_indices = @transform_5, window_bounds = array<i64: 128, 128>}, {pipeline_mode = #tpu.pipeline_mode<synchronous>, transform_indices = @transform_6, window_bounds = array<i64: 1, 128>}, {transform_indices = @transform_7, window_bounds = array<i64: 8, 128>}, {transform_indices = @transform_8, window_bounds = array<i64: 8, 128>}]} {
    %c0 = arith.constant 0 : index
    %c0_0 = arith.constant 0 : index
    %0 = vector.load %arg1[%c0, %c0_0] : memref<8x128xbf16, #tpu.memory_space<vmem>>, vector<8x128xbf16>
    %c0_1 = arith.constant 0 : index
    %c0_2 = arith.constant 0 : index
    %1 = vector.load %arg2[%c0_1, %c0_2] : memref<128x128xbf16, #tpu.memory_space<vmem>>, vector<128x128xbf16>
    %cst = arith.constant dense<0.000000e+00> : vector<8x128xf32>
    %2 = tpu.matmul %0, %1, %cst {dimension_numbers = #tpu.dot_dimension_numbers<[1], [0], [0], [1], [0, 0, 1, 1], [], []>} : vector<8x128xbf16>, vector<128x128xbf16>, vector<8x128xf32> -> vector<8x128xf32>
    %c0_3 = arith.constant 0 : index
    %c0_4 = arith.constant 0 : index
    %3 = vector.load %arg3[%c0_3, %c0_4] : memref<1x128xf32, #tpu.memory_space<vmem>>, vector<1x128xf32>
    %4 = vector.broadcast %3 : vector<1x128xf32> to vector<8x128xf32>
    %5 = arith.addf %2, %4 : vector<8x128xf32>
    %6 = arith.negf %5 : vector<8x128xf32>
    %7 = math.exp %6 : vector<8x128xf32>
    %cst_5 = arith.constant 1.000000e+00 : f32
    %8 = vector.broadcast %cst_5 : f32 to vector<8x128xf32>
    %9 = arith.addf %8, %7 : vector<8x128xf32>
    %10 = arith.divf %8, %9 : vector<8x128xf32>
    %11 = arith.truncf %10 : vector<8x128xf32> to vector<8x128xbf16>
    %c0_6 = arith.constant 0 : index
    %c0_7 = arith.constant 0 : index
    %12 = vector.load %arg4[%c0_6, %c0_7] : memref<128x128xbf16, #tpu.memory_space<vmem>>, vector<128x128xbf16>
    %cst_8 = arith.constant dense<0.000000e+00> : vector<8x128xf32>
    %13 = tpu.matmul %11, %12, %cst_8 {dimension_numbers = #tpu.dot_dimension_numbers<[1], [0], [0], [1], [0, 0, 1, 1], [], []>} : vector<8x128xbf16>, vector<128x128xbf16>, vector<8x128xf32> -> vector<8x128xf32>
    %c0_9 = arith.constant 0 : index
    %c0_10 = arith.constant 0 : index
    %14 = vector.load %arg5[%c0_9, %c0_10] : memref<1x128xf32, #tpu.memory_space<vmem>>, vector<1x128xf32>
    %15 = vector.broadcast %14 : vector<1x128xf32> to vector<8x128xf32>
    %16 = arith.addf %13, %15 : vector<8x128xf32>
    %cst_11 = arith.constant 0.000000e+00 : f32
    %17 = vector.broadcast %cst_11 : f32 to vector<8x128xf32>
    %18 = arith.maximumf %16, %17 : vector<8x128xf32>
    %19 = arith.truncf %18 : vector<8x128xf32> to vector<8x128xbf16>
    %c0_12 = arith.constant 0 : index
    %c0_13 = arith.constant 0 : index
    %20 = vector.load %arg6[%c0_12, %c0_13] : memref<128x128xbf16, #tpu.memory_space<vmem>>, vector<128x128xbf16>
    %cst_14 = arith.constant dense<0.000000e+00> : vector<8x128xf32>
    %21 = tpu.matmul %19, %20, %cst_14 {dimension_numbers = #tpu.dot_dimension_numbers<[1], [0], [0], [1], [0, 0, 1, 1], [], []>} : vector<8x128xbf16>, vector<128x128xbf16>, vector<8x128xf32> -> vector<8x128xf32>
    %c0_15 = arith.constant 0 : index
    %c0_16 = arith.constant 0 : index
    %22 = vector.load %arg7[%c0_15, %c0_16] : memref<1x128xf32, #tpu.memory_space<vmem>>, vector<1x128xf32>
    %23 = vector.broadcast %22 : vector<1x128xf32> to vector<8x128xf32>
    %24 = arith.addf %21, %23 : vector<8x128xf32>
    %c0_17 = arith.constant 0 : index
    %c0_18 = arith.constant 0 : index
    %25 = vector.load %arg9[%c0_17, %c0_18] : memref<8x128xf32, #tpu.memory_space<vmem>>, vector<8x128xf32>
    tpu.vector_store %arg9[%c0_17, %c0_18], %24 {strides = array<i32>} : memref<8x128xf32, #tpu.memory_space<vmem>>, vector<8x128xf32>,
    %c0_19 = arith.constant 0 : index
    %c0_20 = arith.constant 0 : index
    %26 = vector.load %arg8[%c0_19, %c0_20] : memref<8x128xbf16, #tpu.memory_space<vmem>>, vector<8x128xbf16>
    tpu.vector_store %arg8[%c0_19, %c0_20], %11 {strides = array<i32>} : memref<8x128xbf16, #tpu.memory_space<vmem>>, vector<8x128xbf16>,
    return
  }
  func.func @transform_0(%arg0: i32) -> (i32, i32) {
    %c0_i32 = arith.constant 0 : i32
    %c0_i32_0 = arith.constant 0 : i32
    return %arg0, %c0_i32 : i32, i32
  }
  func.func @transform_1(%arg0: i32) -> (i32, i32) {
    %c0_i32 = arith.constant 0 : i32
    %c0_i32_0 = arith.constant 0 : i32
    %c0_i32_1 = arith.constant 0 : i32
    return %c0_i32, %c0_i32_0 : i32, i32
  }
  func.func @transform_2(%arg0: i32) -> (i32, i32) {
    %c0_i32 = arith.constant 0 : i32
    %c0_i32_0 = arith.constant 0 : i32
    %c0_i32_1 = arith.constant 0 : i32
    return %c0_i32, %c0_i32_0 : i32, i32
  }
  func.func @transform_3(%arg0: i32) -> (i32, i32) {
    %c0_i32 = arith.constant 0 : i32
    %c0_i32_0 = arith.constant 0 : i32
    %c0_i32_1 = arith.constant 0 : i32
    return %c0_i32, %c0_i32_0 : i32, i32
  }
  func.func @transform_4(%arg0: i32) -> (i32, i32) {
    %c0_i32 = arith.constant 0 : i32
    %c0_i32_0 = arith.constant 0 : i32
    %c0_i32_1 = arith.constant 0 : i32
    return %c0_i32, %c0_i32_0 : i32, i32
  }
  func.func @transform_5(%arg0: i32) -> (i32, i32) {
    %c0_i32 = arith.constant 0 : i32
    %c0_i32_0 = arith.constant 0 : i32
    %c0_i32_1 = arith.constant 0 : i32
    return %c0_i32, %c0_i32_0 : i32, i32
  }
  func.func @transform_6(%arg0: i32) -> (i32, i32) {
    %c0_i32 = arith.constant 0 : i32
    %c0_i32_0 = arith.constant 0 : i32
    %c0_i32_1 = arith.constant 0 : i32
    return %c0_i32, %c0_i32_0 : i32, i32
  }
  func.func @transform_7(%arg0: i32) -> (i32, i32) {
    %c0_i32 = arith.constant 0 : i32
    %c0_i32_0 = arith.constant 0 : i32
    return %arg0, %c0_i32 : i32, i32
  }
  func.func @transform_8(%arg0: i32) -> (i32, i32) {
    %c0_i32 = arith.constant 0 : i32
    %c0_i32_0 = arith.constant 0 : i32
    return %arg0, %c0_i32 : i32, i32
  }
}

</mosaic_0001>

<llo_original>
// kernel: tpu_custom_call.1
$region0: #{tpu_custom_call.1}
  #allocation0 [shape = 'u32[]', space=smem, size = 0x4, offset = 0x4, fixed_abs, tag = 'smem constant byte address 0x4 - core index']
  #allocation1 [shape = 'u32[144,128]{1,0:T(1,128)}', space=vmem, size = 0x12000, scoped, tag = 'internal scratch']
  %s0 = inlined_call_operand.hbm [shape: bf16[8,128], index: 0, kind: input, shape index: {}]
  %s1 = inlined_call_operand.hbm [shape: bf16[128,128], index: 1, kind: input, shape index: {}]
  %s2 = inlined_call_operand.vmem [shape: f32[1,128], index: 2, kind: input, shape index: {}]
  %s3 = inlined_call_operand.hbm [shape: bf16[128,128], index: 3, kind: input, shape index: {}]
  %s4 = inlined_call_operand.vmem [shape: f32[1,128], index: 4, kind: input, shape index: {}]
  %s5 = inlined_call_operand.hbm [shape: bf16[128,128], index: 5, kind: input, shape index: {}]
  %s6 = inlined_call_operand.vmem [shape: f32[1,128], index: 6, kind: input, shape index: {}]
  %s7 = inlined_call_operand.hbm [shape: bf16[8,128], index: 7, kind: output, shape index: {0}]
  %s8 = inlined_call_operand.hbm [shape: f32[8,128], index: 8, kind: output, shape index: {1}]
  %9 = xla_tuple %s7, %s8
  %s10 = sld [smem:[#allocation0]]
  $region62: #{tpu_custom_call.1} parent=0
    _
  %s12 = ssub.s32 1, %s10
  %s13 = scalar_select 0, %s12, %s10
  $region1: #{tpu_custom_call.1} parent=0
    #allocation2 [shape = 'u8[2048]{0}', space=vmem, size = 0x800, scoped, tag = 'input window, operand 0, single buffered']
    #allocation3 [shape = 's32[1]{0}', space=sflag, size = 0x4, scoped, tag = 'scoped memory for tpu_custom_call.1']
    #allocation4 [shape = 's32[1]{0}', space=sflag, size = 0x4, scoped, tag = 'scoped memory for tpu_custom_call.1']
    #allocation5 [shape = 'u8[32768]{0}', space=vmem, size = 0x8000, scoped, tag = 'input window, operand 1, single buffered']
    #allocation6 [shape = 's32[1]{0}', space=sflag, size = 0x4, scoped, tag = 'scoped memory for tpu_custom_call.1']
    #allocation7 [shape = 'u8[32768]{0}', space=vmem, size = 0x8000, scoped, tag = 'input window, operand 3, single buffered']
    #allocation8 [shape = 'u8[32768]{0}', space=vmem, size = 0x8000, scoped, tag = 'input window, operand 5, single buffered']
    #allocation9 [shape = 's32[1]{0}', space=sflag, size = 0x4, scoped, tag = 'scoped memory for tpu_custom_call.1']
    #allocation10 [shape = 'u8[2048]{0}', space=vmem, size = 0x800, scoped, tag = 'output window, operand 0, single buffered']
    #allocation11 [shape = 'u8[4096]{0}', space=vmem, size = 0x1000, scoped, tag = 'output window, operand 1, single buffered']
    #allocation12 [shape = 's32[1]{0}', space=sflag, size = 0x4, scoped, tag = 'scoped memory for tpu_custom_call.1']
    %14 = vsyncpa [#allocation3], 0
    %15 = vsyncpa [#allocation6], 0
    %16 = vsyncpa [#allocation9], 0
    %17 = vsyncpa [#allocation4], 0
    %18 = vsyncpa [#allocation12], 0
    // Predicated region
    $region2: #{tpu_custom_call.1} parent=1 // pred_check
      _
    $region3: #{tpu_custom_call.1} parent=1 // pred_check_branch
      %20 = sbr.rel (0) target = $region5
    $region4: #{tpu_custom_call.1} parent=1 // pred_region
      %s22 = ssub.s32 64, 64
      %23 = vsyncadd [#allocation3], %s22
      %s25 = sshll.u32 [#allocation2], 4
      %s26 = int_to_ptr.vmem [resolvable:$true] %s25
      %28 = dma.hbm_to_vmem [thread:$0]  %s0, 64, %s26, [#allocation3]
    $region5: #{tpu_custom_call.1} parent=1 // pred_fallthru
      _
    // Predicated region
    $region6: #{tpu_custom_call.1} parent=1 // pred_check
      _
    $region7: #{tpu_custom_call.1} parent=1 // pred_check_branch
      %30 = sbr.rel (0) target = $region9
    $region8: #{tpu_custom_call.1} parent=1 // pred_region
      %s32 = ssub.s32 1024, 1024
      %33 = vsyncadd [#allocation6], %s32
      %s34 = sshll.u32 [#allocation5], 4
      %s35 = int_to_ptr.vmem [resolvable:$true] %s34
      %40 = dma.hbm_to_vmem [thread:$0]  %s1, 1024, %s35, [#allocation6], 64, 64, 4
    $region9: #{tpu_custom_call.1} parent=1 // pred_fallthru
      _
    // Predicated region
    $region10: #{tpu_custom_call.1} parent=1 // pred_check
      _
    $region11: #{tpu_custom_call.1} parent=1 // pred_check_branch
      %42 = sbr.rel (0) target = $region13
    $region12: #{tpu_custom_call.1} parent=1 // pred_region
      _
    $region13: #{tpu_custom_call.1} parent=1 // pred_fallthru
      _
    // Predicated region
    $region14: #{tpu_custom_call.1} parent=1 // pred_check
      _
    $region15: #{tpu_custom_call.1} parent=1 // pred_check_branch
      %44 = sbr.rel (0) target = $region17
    $region16: #{tpu_custom_call.1} parent=1 // pred_region
      %s46 = ssub.s32 1024, 1024
      %47 = vsyncadd [#allocation6], %s46
      %s48 = sshll.u32 [#allocation7], 4
      %s49 = int_to_ptr.vmem [resolvable:$true] %s48
      %54 = dma.hbm_to_vmem [thread:$0]  %s3, 1024, %s49, [#allocation6], 64, 64, 4
    $region17: #{tpu_custom_call.1} parent=1 // pred_fallthru
      _
    // Predicated region
    $region18: #{tpu_custom_call.1} parent=1 // pred_check
      _
    $region19: #{tpu_custom_call.1} parent=1 // pred_check_branch
      %56 = sbr.rel (0) target = $region21
    $region20: #{tpu_custom_call.1} parent=1 // pred_region
      _
    $region21: #{tpu_custom_call.1} parent=1 // pred_fallthru
      _
    // Predicated region
    $region22: #{tpu_custom_call.1} parent=1 // pred_check
      _
    $region23: #{tpu_custom_call.1} parent=1 // pred_check_branch
      %58 = sbr.rel (0) target = $region25
    $region24: #{tpu_custom_call.1} parent=1 // pred_region
      %s60 = ssub.s32 1024, 1024
      %61 = vsyncadd [#allocation9], %s60
      %s62 = sshll.u32 [#allocation8], 4
      %s63 = int_to_ptr.vmem [resolvable:$true] %s62
      %68 = dma.hbm_to_vmem [thread:$0]  %s5, 1024, %s63, [#allocation9], 64, 64, 4
    $region25: #{tpu_custom_call.1} parent=1 // pred_fallthru
      _
    // Predicated region
    $region26: #{tpu_custom_call.1} parent=1 // pred_check
      _
    $region27: #{tpu_custom_call.1} parent=1 // pred_check_branch
      %70 = sbr.rel (0) target = $region29
    $region28: #{tpu_custom_call.1} parent=1 // pred_region
      _
    $region29: #{tpu_custom_call.1} parent=1 // pred_fallthru
      _
    // Predicated region
    $region30: #{tpu_custom_call.1} parent=1 // pred_check
      _
    $region31: #{tpu_custom_call.1} parent=1 // pred_check_branch
      %72 = sbr.rel (0) target = $region33
    $region32: #{tpu_custom_call.1} parent=1 // pred_region
      %73 = dma.done [#allocation3], 64
    $region33: #{tpu_custom_call.1} parent=1 // pred_fallthru
      _
    // Predicated region
    $region34: #{tpu_custom_call.1} parent=1 // pred_check
      _
    $region35: #{tpu_custom_call.1} parent=1 // pred_check_branch
      %75 = sbr.rel (0) target = $region37
    $region36: #{tpu_custom_call.1} parent=1 // pred_region
      %76 = dma.done [#allocation6], 1024
    $region37: #{tpu_custom_call.1} parent=1 // pred_fallthru
      _
    // Predicated region
    $region38: #{tpu_custom_call.1} parent=1 // pred_check
      _
    $region39: #{tpu_custom_call.1} parent=1 // pred_check_branch
      %78 = sbr.rel (0) target = $region41
    $region40: #{tpu_custom_call.1} parent=1 // pred_region
      %79 = dma.done [#allocation6], 1024
    $region41: #{tpu_custom_call.1} parent=1 // pred_fallthru
      _
    // Predicated region
    $region42: #{tpu_custom_call.1} parent=1 // pred_check
      _
    $region43: #{tpu_custom_call.1} parent=1 // pred_check_branch
      %81 = sbr.rel (0) target = $region45
    $region44: #{tpu_custom_call.1} parent=1 // pred_region
      %82 = dma.done [#allocation9], 1024
    $region45: #{tpu_custom_call.1} parent=1 // pred_fallthru
      _
    %v84 = vld [vmem:[#allocation2] sm:$0xf]
    %v85 = vld [vmem:[#allocation5] sm:$0xf]
    %v86 = vld [vmem:[#allocation5 + $0x4] sm:$0xf]
    %v87 = vld [vmem:[#allocation5 + $0x8] sm:$0xf]
    %v88 = vld [vmem:[#allocation5 + $0xc] sm:$0xf]
    %v89 = vld [vmem:[#allocation5 + $0x10] sm:$0xf]
    %v90 = vld [vmem:[#allocation5 + $0x14] sm:$0xf]
    %v91 = vld [vmem:[#allocation5 + $0x18] sm:$0xf]
    %v92 = vld [vmem:[#allocation5 + $0x1c] sm:$0xf]
    %v93 = vld [vmem:[#allocation5 + $0x20] sm:$0xf]
    %v94 = vld [vmem:[#allocation5 + $0x24] sm:$0xf]
    %v95 = vld [vmem:[#allocation5 + $0x28] sm:$0xf]
    %v96 = vld [vmem:[#allocation5 + $0x2c] sm:$0xf]
    %v97 = vld [vmem:[#allocation5 + $0x30] sm:$0xf]
    %v98 = vld [vmem:[#allocation5 + $0x34] sm:$0xf]
    %v99 = vld [vmem:[#allocation5 + $0x38] sm:$0xf]
    %v100 = vld [vmem:[#allocation5 + $0x3c] sm:$0xf]
    %v101 = vld [vmem:[%s2] sm:$0x1]
    %v103 = vlaneseq
    %v104 = vshrl.u32 %v103, 7
    %v105 = vsub.s32 0, %v104
    %v106 = vrot.slane %v101, %v105
    %v124 = vunpack.c.l.b16 %v85
    %v125 = vunpack.c.l.b16 %v86
    %v126 = vunpack.c.l.b16 %v87
    %v127 = vunpack.c.l.b16 %v88
    %v128 = vunpack.c.l.b16 %v89
    %v129 = vunpack.c.l.b16 %v90
    %v130 = vunpack.c.l.b16 %v91
    %v131 = vunpack.c.l.b16 %v92
    %v132 = vunpack.c.l.b16 %v93
    %v133 = vunpack.c.l.b16 %v94
    %v134 = vunpack.c.l.b16 %v95
    %v135 = vunpack.c.l.b16 %v96
    %v136 = vunpack.c.l.b16 %v97
    %v137 = vunpack.c.l.b16 %v98
    %v138 = vunpack.c.l.b16 %v99
    %v139 = vunpack.c.l.b16 %v100
    %v140 = vpack.c.b16 %v125, %v124
    %v141 = vpack.c.b16 %v127, %v126
    %v142 = vpack.c.b16 %v129, %v128
    %v143 = vpack.c.b16 %v131, %v130
    %v144 = vpack.c.b16 %v133, %v132
    %v145 = vpack.c.b16 %v135, %v134
    %v146 = vpack.c.b16 %v137, %v136
    %v147 = vpack.c.b16 %v139, %v138
    %156 = vmatprep.subr.bf16.mxu0 0
    %157 = vmatpush1.bf16.msra.mxu0 %v147
    %158 = vmatprep.subr.bf16.mxu0 0
    %159 = vmatpush1.bf16.msra.mxu0 %v146
    %160 = vmatprep.subr.bf16.mxu0 0
    %161 = vmatpush1.bf16.msra.mxu0 %v145
    %162 = vmatprep.subr.bf16.mxu0 0
    %163 = vmatpush1.bf16.msra.mxu0 %v144
    %164 = vmatprep.subr.bf16.mxu0 0
    %165 = vmatpush1.bf16.msra.mxu0 %v143
    %166 = vmatprep.subr.bf16.mxu0 0
    %167 = vmatpush1.bf16.msra.mxu0 %v142
    %168 = vmatprep.subr.bf16.mxu0 0
    %169 = vmatpush1.bf16.msra.mxu0 %v141
    %170 = vmatprep.subr.bf16.mxu0 0
    %171 = vmatpush1.bf16.msra.mxu0 %v140
    %172 = vmatprep.subr.bf16.mxu0 0
    %173 = vmatpush2.bf16.msra.mxu0 0
    %174 = vmatprep.subr.bf16.mxu0 0
    %175 = vmatpush2.bf16.msra.mxu0 0
    %176 = vmatprep.subr.bf16.mxu0 0
    %177 = vmatpush2.bf16.msra.mxu0 0
    %178 = vmatprep.subr.bf16.mxu0 0
    %179 = vmatpush2.bf16.msra.mxu0 0
    %180 = vmatprep.subr.bf16.mxu0 0
    %181 = vmatpush2.bf16.msra.mxu0 0
    %182 = vmatprep.subr.bf16.mxu0 0
    %183 = vmatpush2.bf16.msra.mxu0 0
    %184 = vmatprep.subr.bf16.mxu0 0
    %185 = vmatpush2.bf16.msra.mxu0 0
    %186 = vmatprep.subr.bf16.mxu0 0
    %187 = vmatpush2.bf16.msra.mxu0 0
    %188 = vmatprep.mubr.bf16.mxu0 0
    %189 = vmatmul.mubr.bf16.gmra.mxu0 %v84
    %v190 = vpop.f32.mrf.mxu0
    %v191 = vadd.f32 %v106, %v190
    %v192 = vpop.f32.mrf.mxu0
    %v193 = vpop.f32.mrf.mxu0
    %v194 = vpop.f32.mrf.mxu0
    %195 = vdwg.mxu0
    %v196 = vxor.u32 %v191, 2147483648
    %v197 = vmul.f32 %v196, 1.442695
    %v198 = vpow.pop %v197
    %v199 = vadd.f32 %v198, 1.0
    %v200 = vrcp.pop %v199
    %v201 = vmul.f32 1.0, %v200
    %v202 = vpack.c.bf16 %v201, %v201
    %v203 = vld [vmem:[#allocation7] sm:$0xf]
    %v204 = vld [vmem:[#allocation7 + $0x4] sm:$0xf]
    %v205 = vld [vmem:[#allocation7 + $0x8] sm:$0xf]
    %v206 = vld [vmem:[#allocation7 + $0xc] sm:$0xf]
    %v207 = vld [vmem:[#allocation7 + $0x10] sm:$0xf]
    %v208 = vld [vmem:[#allocation7 + $0x14] sm:$0xf]
    %v209 = vld [vmem:[#allocation7 + $0x18] sm:$0xf]
    %v210 = vld [vmem:[#allocation7 + $0x1c] sm:$0xf]
    %v211 = vld [vmem:[#allocation7 + $0x20] sm:$0xf]
    %v212 = vld [vmem:[#allocation7 + $0x24] sm:$0xf]
    %v213 = vld [vmem:[#allocation7 + $0x28] sm:$0xf]
    %v214 = vld [vmem:[#allocation7 + $0x2c] sm:$0xf]
    %v215 = vld [vmem:[#allocation7 + $0x30] sm:$0xf]
    %v216 = vld [vmem:[#allocation7 + $0x34] sm:$0xf]
    %v217 = vld [vmem:[#allocation7 + $0x38] sm:$0xf]
    %v218 = vld [vmem:[#allocation7 + $0x3c] sm:$0xf]
    %v219 = vld [vmem:[%s4] sm:$0x1]
    %v221 = vlaneseq
    %v222 = vshrl.u32 %v221, 7
    %v223 = vsub.s32 0, %v222
    %v224 = vrot.slane %v219, %v223
    %v242 = vunpack.c.l.b16 %v203
    %v243 = vunpack.c.l.b16 %v204
    %v244 = vunpack.c.l.b16 %v205
    %v245 = vunpack.c.l.b16 %v206
    %v246 = vunpack.c.l.b16 %v207
    %v247 = vunpack.c.l.b16 %v208
    %v248 = vunpack.c.l.b16 %v209
    %v249 = vunpack.c.l.b16 %v210
    %v250 = vunpack.c.l.b16 %v211
    %v251 = vunpack.c.l.b16 %v212
    %v252 = vunpack.c.l.b16 %v213
    %v253 = vunpack.c.l.b16 %v214
    %v254 = vunpack.c.l.b16 %v215
    %v255 = vunpack.c.l.b16 %v216
    %v256 = vunpack.c.l.b16 %v217
    %v257 = vunpack.c.l.b16 %v218
    %v258 = vpack.c.b16 %v243, %v242
    %v259 = vpack.c.b16 %v245, %v244
    %v260 = vpack.c.b16 %v247, %v246
    %v261 = vpack.c.b16 %v249, %v248
    %v262 = vpack.c.b16 %v251, %v250
    %v263 = vpack.c.b16 %v253, %v252
    %v264 = vpack.c.b16 %v255, %v254
    %v265 = vpack.c.b16 %v257, %v256
    %274 = vmatprep.subr.bf16.mxu0 0
    %275 = vmatpush1.bf16.msra.mxu0 %v265
    %276 = vmatprep.subr.bf16.mxu0 0
    %277 = vmatpush1.bf16.msra.mxu0 %v264
    %278 = vmatprep.subr.bf16.mxu0 0
    %279 = vmatpush1.bf16.msra.mxu0 %v263
    %280 = vmatprep.subr.bf16.mxu0 0
    %281 = vmatpush1.bf16.msra.mxu0 %v262
    %282 = vmatprep.subr.bf16.mxu0 0
    %283 = vmatpush1.bf16.msra.mxu0 %v261
    %284 = vmatprep.subr.bf16.mxu0 0
    %285 = vmatpush1.bf16.msra.mxu0 %v260
    %286 = vmatprep.subr.bf16.mxu0 0
    %287 = vmatpush1.bf16.msra.mxu0 %v259
    %288 = vmatprep.subr.bf16.mxu0 0
    %289 = vmatpush1.bf16.msra.mxu0 %v258
    %290 = vmatprep.subr.bf16.mxu0 0
    %291 = vmatpush2.bf16.msra.mxu0 0
    %292 = vmatprep.subr.bf16.mxu0 0
    %293 = vmatpush2.bf16.msra.mxu0 0
    %294 = vmatprep.subr.bf16.mxu0 0
    %295 = vmatpush2.bf16.msra.mxu0 0
    %296 = vmatprep.subr.bf16.mxu0 0
    %297 = vmatpush2.bf16.msra.mxu0 0
    %298 = vmatprep.subr.bf16.mxu0 0
    %299 = vmatpush2.bf16.msra.mxu0 0
    %300 = vmatprep.subr.bf16.mxu0 0
    %301 = vmatpush2.bf16.msra.mxu0 0
    %302 = vmatprep.subr.bf16.mxu0 0
    %303 = vmatpush2.bf16.msra.mxu0 0
    %304 = vmatprep.subr.bf16.mxu0 0
    %305 = vmatpush2.bf16.msra.mxu0 0
    %306 = vmatprep.mubr.bf16.mxu0 0
    %307 = vmatmul.mubr.bf16.gmra.mxu0 %v202
    %v308 = vpop.f32.mrf.mxu0
    %v309 = vadd.f32 %v224, %v308
    %v310 = vpop.f32.mrf.mxu0
    %v311 = vpop.f32.mrf.mxu0
    %v312 = vpop.f32.mrf.mxu0
    %313 = vdwg.mxu0
    %v314 = vmax.f32 %v309, 0.0
    %v315 = vpack.c.bf16 %v314, %v314
    %v316 = vld [vmem:[#allocation8] sm:$0xf]
    %v317 = vld [vmem:[#allocation8 + $0x4] sm:$0xf]
    %v318 = vld [vmem:[#allocation8 + $0x8] sm:$0xf]
    %v319 = vld [vmem:[#allocation8 + $0xc] sm:$0xf]
    %v320 = vld [vmem:[#allocation8 + $0x10] sm:$0xf]
    %v321 = vld [vmem:[#allocation8 + $0x14] sm:$0xf]
    %v322 = vld [vmem:[#allocation8 + $0x18] sm:$0xf]
    %v323 = vld [vmem:[#allocation8 + $0x1c] sm:$0xf]
    %v324 = vld [vmem:[#allocation8 + $0x20] sm:$0xf]
    %v325 = vld [vmem:[#allocation8 + $0x24] sm:$0xf]
    %v326 = vld [vmem:[#allocation8 + $0x28] sm:$0xf]
    %v327 = vld [vmem:[#allocation8 + $0x2c] sm:$0xf]
    %v328 = vld [vmem:[#allocation8 + $0x30] sm:$0xf]
    %v329 = vld [vmem:[#allocation8 + $0x34] sm:$0xf]
    %v330 = vld [vmem:[#allocation8 + $0x38] sm:$0xf]
    %v331 = vld [vmem:[#allocation8 + $0x3c] sm:$0xf]
    %v332 = vld [vmem:[%s6] sm:$0x1]
    %v334 = vlaneseq
    %v335 = vshrl.u32 %v334, 7
    %v336 = vsub.s32 0, %v335
    %v337 = vrot.slane %v332, %v336
    %v355 = vunpack.c.l.b16 %v316
    %v356 = vunpack.c.l.b16 %v317
    %v357 = vunpack.c.l.b16 %v318
    %v358 = vunpack.c.l.b16 %v319
    %v359 = vunpack.c.l.b16 %v320
    %v360 = vunpack.c.l.b16 %v321
    %v361 = vunpack.c.l.b16 %v322
    %v362 = vunpack.c.l.b16 %v323
    %v363 = vunpack.c.l.b16 %v324
    %v364 = vunpack.c.l.b16 %v325
    %v365 = vunpack.c.l.b16 %v326
    %v366 = vunpack.c.l.b16 %v327
    %v367 = vunpack.c.l.b16 %v328
    %v368 = vunpack.c.l.b16 %v329
    %v369 = vunpack.c.l.b16 %v330
    %v370 = vunpack.c.l.b16 %v331
    %v371 = vpack.c.b16 %v356, %v355
    %v372 = vpack.c.b16 %v358, %v357
    %v373 = vpack.c.b16 %v360, %v359
    %v374 = vpack.c.b16 %v362, %v361
    %v375 = vpack.c.b16 %v364, %v363
    %v376 = vpack.c.b16 %v366, %v365
    %v377 = vpack.c.b16 %v368, %v367
    %v378 = vpack.c.b16 %v370, %v369
    %387 = vmatprep.subr.bf16.mxu0 0
    %388 = vmatpush1.bf16.msra.mxu0 %v378
    %389 = vmatprep.subr.bf16.mxu0 0
    %390 = vmatpush1.bf16.msra.mxu0 %v377
    %391 = vmatprep.subr.bf16.mxu0 0
    %392 = vmatpush1.bf16.msra.mxu0 %v376
    %393 = vmatprep.subr.bf16.mxu0 0
    %394 = vmatpush1.bf16.msra.mxu0 %v375
    %395 = vmatprep.subr.bf16.mxu0 0
    %396 = vmatpush1.bf16.msra.mxu0 %v374
    %397 = vmatprep.subr.bf16.mxu0 0
    %398 = vmatpush1.bf16.msra.mxu0 %v373
    %399 = vmatprep.subr.bf16.mxu0 0
    %400 = vmatpush1.bf16.msra.mxu0 %v372
    %401 = vmatprep.subr.bf16.mxu0 0
    %402 = vmatpush1.bf16.msra.mxu0 %v371
    %403 = vmatprep.subr.bf16.mxu0 0
    %404 = vmatpush2.bf16.msra.mxu0 0
    %405 = vmatprep.subr.bf16.mxu0 0
    %406 = vmatpush2.bf16.msra.mxu0 0
    %407 = vmatprep.subr.bf16.mxu0 0
    %408 = vmatpush2.bf16.msra.mxu0 0
    %409 = vmatprep.subr.bf16.mxu0 0
    %410 = vmatpush2.bf16.msra.mxu0 0
    %411 = vmatprep.subr.bf16.mxu0 0
    %412 = vmatpush2.bf16.msra.mxu0 0
    %413 = vmatprep.subr.bf16.mxu0 0
    %414 = vmatpush2.bf16.msra.mxu0 0
    %415 = vmatprep.subr.bf16.mxu0 0
    %416 = vmatpush2.bf16.msra.mxu0 0
    %417 = vmatprep.subr.bf16.mxu0 0
    %418 = vmatpush2.bf16.msra.mxu0 0
    %419 = vmatprep.mubr.bf16.mxu0 0
    %420 = vmatmul.mubr.bf16.gmra.mxu0 %v315
    %v421 = vpop.f32.mrf.mxu0
    %v422 = vadd.f32 %v337, %v421
    %v423 = vpop.f32.mrf.mxu0
    %v424 = vpop.f32.mrf.mxu0
    %v425 = vpop.f32.mrf.mxu0
    %426 = vdwg.mxu0
    %427 = vst [vmem:[#allocation11] sm:$0xff] %v422
    %428 = vst [vmem:[#allocation10] sm:$0xf] %v202
    // Predicated region
    $region46: #{tpu_custom_call.1} parent=1 // pred_check
      _
    $region47: #{tpu_custom_call.1} parent=1 // pred_check_branch
      %430 = sbr.rel (0) target = $region49
    $region48: #{tpu_custom_call.1} parent=1 // pred_region
      %s432 = ssub.s32 64, 64
      %433 = vsyncadd [#allocation4], %s432
      %s435 = sshll.u32 [#allocation10], 4
      %s436 = int_to_ptr.vmem [resolvable:$true] %s435
      %438 = dma.vmem_to_hbm [thread:$0]  %s436, 64, %s7, [#allocation4]
    $region49: #{tpu_custom_call.1} parent=1 // pred_fallthru
      _
    // Predicated region
    $region50: #{tpu_custom_call.1} parent=1 // pred_check
      _
    $region51: #{tpu_custom_call.1} parent=1 // pred_check_branch
      %440 = sbr.rel (0) target = $region53
    $region52: #{tpu_custom_call.1} parent=1 // pred_region
      %s442 = ssub.s32 128, 128
      %443 = vsyncadd [#allocation12], %s442
      %s445 = sshll.u32 [#allocation11], 4
      %s446 = int_to_ptr.vmem [resolvable:$true] %s445
      %448 = dma.vmem_to_hbm [thread:$0]  %s446, 128, %s8, [#allocation12]
    $region53: #{tpu_custom_call.1} parent=1 // pred_fallthru
      _
    // Predicated region
    $region54: #{tpu_custom_call.1} parent=1 // pred_check
      _
    $region55: #{tpu_custom_call.1} parent=1 // pred_check_branch
      %450 = sbr.rel (0) target = $region57
    $region56: #{tpu_custom_call.1} parent=1 // pred_region
      %451 = dma.done [#allocation4], 64
    $region57: #{tpu_custom_call.1} parent=1 // pred_fallthru
      _
    // Predicated region
    $region58: #{tpu_custom_call.1} parent=1 // pred_check
      _
    $region59: #{tpu_custom_call.1} parent=1 // pred_check_branch
      %453 = sbr.rel (0) target = $region61
    $region60: #{tpu_custom_call.1} parent=1 // pred_region
      %454 = dma.done [#allocation12], 128
    $region61: #{tpu_custom_call.1} parent=1 // pred_fallthru
      _
    %455 = vsyncpa [#allocation3], 1
    %456 = vsyncpa [#allocation6], 1
    %457 = vsyncpa [#allocation9], 1
    %458 = vsyncpa [#allocation4], 1
    %459 = vsyncpa [#allocation12], 1

</llo_original>
